<compile_context>
chip_gen: v6e
topology: v6e:2x2x1
jax: 0.10.0
libtpu: 0.0.40
codegen_flags: <defaults>
</compile_context>

<pallas_src>
import functools

import jax
import jax.numpy as jnp
from jax import lax
from jax.experimental import pallas as pl
from jax.experimental.pallas import tpu as pltpu


def _dummy_gpt_kernel(seq_len, ids_ref, tok_hbm, pos_hbm, w_ref, out_ref,
                      x_ref, pos_ref, sems):
    """Grid = (N // TN, V // TV).

    At v == 0: gather TN token rows + TN positional rows from HBM into VMEM
    scratch and add them (x = tok + pos; dropout / trf blocks / final norm are
    identity).  At every (n, v): compute the (TN, TV) logits tile on the MXU.
    """
    n = pl.program_id(0)
    v = pl.program_id(1)
    TN = x_ref.shape[0]
    V = tok_hbm.shape[0]

    @pl.when(v == 0)
    def _gather():
        base = n * TN

        # ---- token rows: one DMA per row (data-dependent gather), all started
        # before any wait; shared semaphore sems[0].
        def _start_tok(r):
            # Clamp ids so a bad token id can never become an OOB HBM read.
            tok_row = jnp.clip(ids_ref[base + r], 0, V - 1)
            pltpu.make_async_copy(tok_hbm.at[pl.ds(tok_row, 1)],
                                  x_ref.at[pl.ds(r, 1)],
                                  sems.at[0]).start()

        if TN <= 32:                       # static unroll: LLO sees all starts
            for r in range(TN):
                _start_tok(r)
        else:
            def _tok_body(r, carry):
                _start_tok(r)
                return carry
            lax.fori_loop(0, TN, _tok_body, 0)

        # ---- positional rows: contiguous block DMAs when the tile is aligned
        # with the sequence length; per-row fallback otherwise.  Shared
        # semaphore sems[1].
        if TN % seq_len == 0:
            # Tile spans whole sequences: TN // seq_len copies of pos[0:S].
            n_chunks = TN // seq_len
            for j in range(n_chunks):
                pltpu.make_async_copy(
                    pos_hbm.at[pl.ds(0, seq_len)],
                    pos_ref.at[pl.ds(j * seq_len, seq_len)],
                    sems.at[1]).start()
            pos_waits, pos_rows = n_chunks, seq_len
        elif seq_len % TN == 0:
            # Tile lies inside one sequence: single contiguous copy.
            p0 = lax.rem(base, seq_len)
            pltpu.make_async_copy(pos_hbm.at[pl.ds(p0, TN)],
                                  pos_ref,
                                  sems.at[1]).start()
            pos_waits, pos_rows = 1, TN
        else:
            # General fallback: one DMA per row.
            def _pos_body(r, carry):
                p = lax.rem(base + r, seq_len)
                pltpu.make_async_copy(pos_hbm.at[pl.ds(p, 1)],
                                      pos_ref.at[pl.ds(r, 1)],
                                      sems.at[1]).start()
                return carry
            lax.fori_loop(0, TN, _pos_body, 0)
            pos_waits, pos_rows = TN, 1

        # ---- drain both semaphores (one wait per issued copy; descriptors
        # only need matching transfer sizes).
        def _wait_tok(r, carry):
            pltpu.make_async_copy(tok_hbm.at[pl.ds(0, 1)],
                                  x_ref.at[pl.ds(0, 1)],
                                  sems.at[0]).wait()
            return carry
        lax.fori_loop(0, TN, _wait_tok, 0)

        for _ in range(pos_waits):
            pltpu.make_async_copy(pos_hbm.at[pl.ds(0, pos_rows)],
                                  pos_ref.at[pl.ds(0, pos_rows)],
                                  sems.at[1]).wait()

        # x = tok_embeds + pos_embeds.
        # dropout (eval mode), transformer blocks, final norm: identity.
        # TODO(synk): train-mode dropout (stochastic mask + 1/(1-p) scale) is
        # not implemented; eval-mode identity semantics are used.
        x_ref[...] = x_ref[...] + pos_ref[...]

    # out_head: logits tile = x @ W[v_tile].T ; weight stays [V, E] (no wrapper
    # transpose) -- contraction on both operands' E dim, f32 accumulation.
    out_ref[...] = jnp.einsum(
        'ne,ve->nv', x_ref[...], w_ref[...],
        preferred_element_type=jnp.float32).astype(out_ref.dtype)


def _largest_divisor(n, cap):
    d = min(n, cap)
    while d > 1 and n % d:
        d -= 1
    return d


def dummy_gpt_forward(in_idx, tok_emb, pos_emb, w_out, *,
                      tile_n=None, tile_v=None):
    """Wrapper: flatten ids, pick tiles, launch the Pallas kernel.

    tok_emb: [vocab, emb], pos_emb: [context, emb], w_out: [vocab, emb]
    (nn.Linear(E, V).weight layout).  Returns f32 logits [B, S, vocab].
    """
    B, S = in_idx.shape
    V, E = tok_emb.shape
    N = B * S
    param_dtype = tok_emb.dtype

    # Tile selection: tile_n multiple of 8 (sublane), tile_v a multiple of 128
    # when possible (lane-dense stores); sizes stay far below v7x's 64 MiB VMEM
    # even with BlockSpec double-buffering.
    if tile_n is None:
        tile_n = _largest_divisor(N, 256)
    if tile_v is None:
        tile_v = V
        for cand in (512, 256, 128):
            if V % cand == 0:
                tile_v = cand
                break
    assert N % tile_n == 0, "tile_n must divide B*S"
    assert V % tile_v == 0, "tile_v must divide vocab_size"

    ids = in_idx.reshape(N).astype(jnp.int32)   # scalar-prefetched into SMEM

    kernel = functools.partial(_dummy_gpt_kernel, S)
    grid = (N // tile_n, V // tile_v)

    logits_flat = pl.pallas_call(
        kernel,
        out_shape=jax.ShapeDtypeStruct((N, V), jnp.float32),
        grid_spec=pltpu.PrefetchScalarGridSpec(
            num_scalar_prefetch=1,
            grid=grid,
            in_specs=[
                pl.BlockSpec(memory_space=pl.ANY),   # tok_emb: HBM, DMA gather
                pl.BlockSpec(memory_space=pl.ANY),   # pos_emb: HBM, DMA gather
                pl.BlockSpec((tile_v, E), lambda n, v, ids: (v, 0)),  # W tile
            ],
            out_specs=pl.BlockSpec((tile_n, tile_v), lambda n, v, ids: (n, v)),
            scratch_shapes=[
                pltpu.VMEM((tile_n, E), param_dtype),   # gathered tok rows / x
                pltpu.VMEM((tile_n, E), param_dtype),   # gathered pos rows
                pltpu.SemaphoreType.DMA((2,)),          # shared sems: tok, pos
            ],
        ),
        compiler_params=pltpu.CompilerParams(
            dimension_semantics=("parallel", "arbitrary"),
            vmem_limit_bytes=48 * 1024 * 1024,
        ),
    )(ids, tok_emb, pos_emb, w_out)

    return logits_flat.reshape(B, S, V)


if __name__ == "__main__":
    # Small GPT-like config (GPT_CONFIG_124M structure, toy sizes).
    cfg = dict(vocab_size=256, context_length=16, emb_dim=32,
               n_layers=2, drop_rate=0.1)
    B, S = 2, 16

    key = jax.random.PRNGKey(0)
    k_tok, k_pos, k_out, k_idx = jax.random.split(key, 4)

    tok_emb = 0.02 * jax.random.normal(
        k_tok, (cfg["vocab_size"], cfg["emb_dim"]), dtype=jnp.float32)
    pos_emb = 0.02 * jax.random.normal(
        k_pos, (cfg["context_length"], cfg["emb_dim"]), dtype=jnp.float32)
    w_out = 0.02 * jax.random.normal(
        k_out, (cfg["vocab_size"], cfg["emb_dim"]), dtype=jnp.float32)  # [V, E]

    in_idx = jax.random.randint(k_idx, (B, S), 0, cfg["vocab_size"],
                                dtype=jnp.int32)

    # Pure-JAX reference of the same forward pass (f32).
    ref = (tok_emb[in_idx] + pos_emb[:S][None, :, :]) @ w_out.T

    # f32 run (matches the PyTorch module's dtype).  tile_n=8 < S=16 exercises
    # the single-contiguous positional DMA path and a 4x2 grid (scratch reuse
    # across V tiles + v==0 gating).
    logits = dummy_gpt_forward(in_idx, tok_emb, pos_emb, w_out,
                               tile_n=8, tile_v=128)
    logits = jax.block_until_ready(logits)
    assert logits.shape == (B, S, cfg["vocab_size"])
    assert jnp.allclose(logits, ref, atol=1e-4, rtol=1e-4)

    # bf16 compute path (params cast once; bf16 MXU inputs, f32 accumulation,
    # f32 logits).  tile_n=32 > S exercises the chunked positional DMA path.
    logits_bf16 = dummy_gpt_forward(
        in_idx,
        tok_emb.astype(jnp.bfloat16),
        pos_emb.astype(jnp.bfloat16),
        w_out.astype(jnp.bfloat16),
        tile_n=32, tile_v=256)
    logits_bf16 = jax.block_until_ready(logits_bf16)
    assert jnp.allclose(logits_bf16, ref, atol=2e-3, rtol=2e-2)

    print("KERNEL_OK")
</pallas_src>

<mosaic_0001>
module attributes {stable_mosaic.version = 11 : i64} {
  func.func @_dummy_gpt_kernel(%arg0: i32, %arg1: i32, %arg2: memref<32xi32, #tpu.memory_space<smem>>, %arg3: memref<256x32xf32, #tpu.memory_space<any>>, %arg4: memref<16x32xf32, #tpu.memory_space<any>>, %arg5: memref<128x32xf32, #tpu.memory_space<vmem>>, %arg6: memref<8x128xf32, #tpu.memory_space<vmem>>, %arg7: memref<8x32xf32, #tpu.memory_space<vmem>>, %arg8: memref<8x32xf32, #tpu.memory_space<vmem>>, %arg9: memref<2x!tpu.dma_semaphore, #tpu.memory_space<semaphore_mem>>) attributes {dimension_semantics = [#tpu.dimension_semantics<parallel>, #tpu.dimension_semantics<arbitrary>], iteration_bounds = array<i64: 4, 2>, scalar_prefetch = 1 : i64, scratch_operands = 3 : i64, tpu.core_type = #tpu.core_type<tc>, window_params = [{}, {}, {transform_indices = @transform_2, window_bounds = array<i64: 128, 32>}, {transform_indices = @transform_3, window_bounds = array<i64: 8, 128>}]} {
    %c0_i32 = arith.constant 0 : i32
    %0 = arith.cmpi eq, %arg1, %c0_i32 : i32
    %1 = arith.extui %0 : i1 to i32
    %c0_i32_0 = arith.constant 0 : i32
    %2 = arith.cmpi ne, %1, %c0_i32_0 : i32
    scf.if %2 {
      %c8_i32 = arith.constant 8 : i32
      %7 = arith.muli %arg0, %c8_i32 : i32
      %c0_i32_6 = arith.constant 0 : i32
      %8 = arith.addi %7, %c0_i32_6 : i32
      %9 = arith.index_cast %8 : i32 to index
      %10 = memref.load %arg2[%9] : memref<32xi32, #tpu.memory_space<smem>>
      %c0_i32_7 = arith.constant 0 : i32
      %c255_i32 = arith.constant 255 : i32
      %11 = arith.maxsi %c0_i32_7, %10 : i32
      %12 = arith.minsi %c255_i32, %11 : i32
      %c0_i32_8 = arith.constant 0 : i32
      %c0_i32_9 = arith.constant 0 : i32
      %13 = tpu.memref_slice %arg3[%12, %c0_i32_9] : memref<256x32xf32, #tpu.memory_space<any>> -> memref<1x32xf32, #tpu.memory_space<any>>
      %c0_i32_10 = arith.constant 0 : i32
      %c0_i32_11 = arith.constant 0 : i32
      %14 = tpu.memref_slice %arg7[%c0_i32_10, %c0_i32_11] : memref<8x32xf32, #tpu.memory_space<vmem>> -> memref<1x32xf32, #tpu.memory_space<vmem>>
      %15 = tpu.memref_slice %arg9[%c0_i32_8] : memref<2x!tpu.dma_semaphore, #tpu.memory_space<semaphore_mem>> -> memref<1x!tpu.dma_semaphore, #tpu.memory_space<semaphore_mem>>
      %16 = tpu.memref_squeeze %15 : memref<1x!tpu.dma_semaphore, #tpu.memory_space<semaphore_mem>> -> memref<!tpu.dma_semaphore, #tpu.memory_space<semaphore_mem>>
      tpu.enqueue_dma source(%13 : memref<1x32xf32, #tpu.memory_space<any>>) target(%14 : memref<1x32xf32, #tpu.memory_space<vmem>>) target_semaphore(%16 : memref<!tpu.dma_semaphore, #tpu.memory_space<semaphore_mem>>)
      %c1_i32 = arith.constant 1 : i32
      %17 = arith.addi %7, %c1_i32 : i32
      %18 = arith.index_cast %17 : i32 to index
      %19 = memref.load %arg2[%18] : memref<32xi32, #tpu.memory_space<smem>>
      %c0_i32_12 = arith.constant 0 : i32
      %c255_i32_13 = arith.constant 255 : i32
      %20 = arith.maxsi %c0_i32_12, %19 : i32
      %21 = arith.minsi %c255_i32_13, %20 : i32
      %c0_i32_14 = arith.constant 0 : i32
      %c0_i32_15 = arith.constant 0 : i32
      %22 = tpu.memref_slice %arg3[%21, %c0_i32_15] : memref<256x32xf32, #tpu.memory_space<any>> -> memref<1x32xf32, #tpu.memory_space<any>>
      %c1_i32_16 = arith.constant 1 : i32
      %c0_i32_17 = arith.constant 0 : i32
      %23 = tpu.memref_slice %arg7[%c1_i32_16, %c0_i32_17] : memref<8x32xf32, #tpu.memory_space<vmem>> -> memref<1x32xf32, #tpu.memory_space<vmem>>
      %24 = tpu.memref_slice %arg9[%c0_i32_14] : memref<2x!tpu.dma_semaphore, #tpu.memory_space<semaphore_mem>> -> memref<1x!tpu.dma_semaphore, #tpu.memory_space<semaphore_mem>>
      %25 = tpu.memref_squeeze %24 : memref<1x!tpu.dma_semaphore, #tpu.memory_space<semaphore_mem>> -> memref<!tpu.dma_semaphore, #tpu.memory_space<semaphore_mem>>
      tpu.enqueue_dma source(%22 : memref<1x32xf32, #tpu.memory_space<any>>) target(%23 : memref<1x32xf32, #tpu.memory_space<vmem>>) target_semaphore(%25 : memref<!tpu.dma_semaphore, #tpu.memory_space<semaphore_mem>>)
      %c2_i32 = arith.constant 2 : i32
      %26 = arith.addi %7, %c2_i32 : i32
      %27 = arith.index_cast %26 : i32 to index
      %28 = memref.load %arg2[%27] : memref<32xi32, #tpu.memory_space<smem>>
      %c0_i32_18 = arith.constant 0 : i32
      %c255_i32_19 = arith.constant 255 : i32
      %29 = arith.maxsi %c0_i32_18, %28 : i32
      %30 = arith.minsi %c255_i32_19, %29 : i32
      %c0_i32_20 = arith.constant 0 : i32
      %c0_i32_21 = arith.constant 0 : i32
      %31 = tpu.memref_slice %arg3[%30, %c0_i32_21] : memref<256x32xf32, #tpu.memory_space<any>> -> memref<1x32xf32, #tpu.memory_space<any>>
      %c2_i32_22 = arith.constant 2 : i32
      %c0_i32_23 = arith.constant 0 : i32
      %32 = tpu.memref_slice %arg7[%c2_i32_22, %c0_i32_23] : memref<8x32xf32, #tpu.memory_space<vmem>> -> memref<1x32xf32, #tpu.memory_space<vmem>>
      %33 = tpu.memref_slice %arg9[%c0_i32_20] : memref<2x!tpu.dma_semaphore, #tpu.memory_space<semaphore_mem>> -> memref<1x!tpu.dma_semaphore, #tpu.memory_space<semaphore_mem>>
      %34 = tpu.memref_squeeze %33 : memref<1x!tpu.dma_semaphore, #tpu.memory_space<semaphore_mem>> -> memref<!tpu.dma_semaphore, #tpu.memory_space<semaphore_mem>>
      tpu.enqueue_dma source(%31 : memref<1x32xf32, #tpu.memory_space<any>>) target(%32 : memref<1x32xf32, #tpu.memory_space<vmem>>) target_semaphore(%34 : memref<!tpu.dma_semaphore, #tpu.memory_space<semaphore_mem>>)
      %c3_i32 = arith.constant 3 : i32
      %35 = arith.addi %7, %c3_i32 : i32
      %36 = arith.index_cast %35 : i32 to index
      %37 = memref.load %arg2[%36] : memref<32xi32, #tpu.memory_space<smem>>
      %c0_i32_24 = arith.constant 0 : i32
      %c255_i32_25 = arith.constant 255 : i32
      %38 = arith.maxsi %c0_i32_24, %37 : i32
      %39 = arith.minsi %c255_i32_25, %38 : i32
      %c0_i32_26 = arith.constant 0 : i32
      %c0_i32_27 = arith.constant 0 : i32
      %40 = tpu.memref_slice %arg3[%39, %c0_i32_27] : memref<256x32xf32, #tpu.memory_space<any>> -> memref<1x32xf32, #tpu.memory_space<any>>
      %c3_i32_28 = arith.constant 3 : i32
      %c0_i32_29 = arith.constant 0 : i32
      %41 = tpu.memref_slice %arg7[%c3_i32_28, %c0_i32_29] : memref<8x32xf32, #tpu.memory_space<vmem>> -> memref<1x32xf32, #tpu.memory_space<vmem>>
      %42 = tpu.memref_slice %arg9[%c0_i32_26] : memref<2x!tpu.dma_semaphore, #tpu.memory_space<semaphore_mem>> -> memref<1x!tpu.dma_semaphore, #tpu.memory_space<semaphore_mem>>
      %43 = tpu.memref_squeeze %42 : memref<1x!tpu.dma_semaphore, #tpu.memory_space<semaphore_mem>> -> memref<!tpu.dma_semaphore, #tpu.memory_space<semaphore_mem>>
      tpu.enqueue_dma source(%40 : memref<1x32xf32, #tpu.memory_space<any>>) target(%41 : memref<1x32xf32, #tpu.memory_space<vmem>>) target_semaphore(%43 : memref<!tpu.dma_semaphore, #tpu.memory_space<semaphore_mem>>)
      %c4_i32 = arith.constant 4 : i32
      %44 = arith.addi %7, %c4_i32 : i32
      %45 = arith.index_cast %44 : i32 to index
      %46 = memref.load %arg2[%45] : memref<32xi32, #tpu.memory_space<smem>>
      %c0_i32_30 = arith.constant 0 : i32
      %c255_i32_31 = arith.constant 255 : i32
      %47 = arith.maxsi %c0_i32_30, %46 : i32
      %48 = arith.minsi %c255_i32_31, %47 : i32
      %c0_i32_32 = arith.constant 0 : i32
      %c0_i32_33 = arith.constant 0 : i32
      %49 = tpu.memref_slice %arg3[%48, %c0_i32_33] : memref<256x32xf32, #tpu.memory_space<any>> -> memref<1x32xf32, #tpu.memory_space<any>>
      %c4_i32_34 = arith.constant 4 : i32
      %c0_i32_35 = arith.constant 0 : i32
      %50 = tpu.memref_slice %arg7[%c4_i32_34, %c0_i32_35] : memref<8x32xf32, #tpu.memory_space<vmem>> -> memref<1x32xf32, #tpu.memory_space<vmem>>
      %51 = tpu.memref_slice %arg9[%c0_i32_32] : memref<2x!tpu.dma_semaphore, #tpu.memory_space<semaphore_mem>> -> memref<1x!tpu.dma_semaphore, #tpu.memory_space<semaphore_mem>>
      %52 = tpu.memref_squeeze %51 : memref<1x!tpu.dma_semaphore, #tpu.memory_space<semaphore_mem>> -> memref<!tpu.dma_semaphore, #tpu.memory_space<semaphore_mem>>
      tpu.enqueue_dma source(%49 : memref<1x32xf32, #tpu.memory_space<any>>) target(%50 : memref<1x32xf32, #tpu.memory_space<vmem>>) target_semaphore(%52 : memref<!tpu.dma_semaphore, #tpu.memory_space<semaphore_mem>>)
      %c5_i32 = arith.constant 5 : i32
      %53 = arith.addi %7, %c5_i32 : i32
      %54 = arith.index_cast %53 : i32 to index
      %55 = memref.load %arg2[%54] : memref<32xi32, #tpu.memory_space<smem>>
      %c0_i32_36 = arith.constant 0 : i32
      %c255_i32_37 = arith.constant 255 : i32
      %56 = arith.maxsi %c0_i32_36, %55 : i32
      %57 = arith.minsi %c255_i32_37, %56 : i32
      %c0_i32_38 = arith.constant 0 : i32
      %c0_i32_39 = arith.constant 0 : i32
      %58 = tpu.memref_slice %arg3[%57, %c0_i32_39] : memref<256x32xf32, #tpu.memory_space<any>> -> memref<1x32xf32, #tpu.memory_space<any>>
      %c5_i32_40 = arith.constant 5 : i32
      %c0_i32_41 = arith.constant 0 : i32
      %59 = tpu.memref_slice %arg7[%c5_i32_40, %c0_i32_41] : memref<8x32xf32, #tpu.memory_space<vmem>> -> memref<1x32xf32, #tpu.memory_space<vmem>>
      %60 = tpu.memref_slice %arg9[%c0_i32_38] : memref<2x!tpu.dma_semaphore, #tpu.memory_space<semaphore_mem>> -> memref<1x!tpu.dma_semaphore, #tpu.memory_space<semaphore_mem>>
      %61 = tpu.memref_squeeze %60 : memref<1x!tpu.dma_semaphore, #tpu.memory_space<semaphore_mem>> -> memref<!tpu.dma_semaphore, #tpu.memory_space<semaphore_mem>>
      tpu.enqueue_dma source(%58 : memref<1x32xf32, #tpu.memory_space<any>>) target(%59 : memref<1x32xf32, #tpu.memory_space<vmem>>) target_semaphore(%61 : memref<!tpu.dma_semaphore, #tpu.memory_space<semaphore_mem>>)
      %c6_i32 = arith.constant 6 : i32
      %62 = arith.addi %7, %c6_i32 : i32
      %63 = arith.index_cast %62 : i32 to index
      %64 = memref.load %arg2[%63] : memref<32xi32, #tpu.memory_space<smem>>
      %c0_i32_42 = arith.constant 0 : i32
      %c255_i32_43 = arith.constant 255 : i32
      %65 = arith.maxsi %c0_i32_42, %64 : i32
      %66 = arith.minsi %c255_i32_43, %65 : i32
      %c0_i32_44 = arith.constant 0 : i32
      %c0_i32_45 = arith.constant 0 : i32
      %67 = tpu.memref_slice %arg3[%66, %c0_i32_45] : memref<256x32xf32, #tpu.memory_space<any>> -> memref<1x32xf32, #tpu.memory_space<any>>
      %c6_i32_46 = arith.constant 6 : i32
      %c0_i32_47 = arith.constant 0 : i32
      %68 = tpu.memref_slice %arg7[%c6_i32_46, %c0_i32_47] : memref<8x32xf32, #tpu.memory_space<vmem>> -> memref<1x32xf32, #tpu.memory_space<vmem>>
      %69 = tpu.memref_slice %arg9[%c0_i32_44] : memref<2x!tpu.dma_semaphore, #tpu.memory_space<semaphore_mem>> -> memref<1x!tpu.dma_semaphore, #tpu.memory_space<semaphore_mem>>
      %70 = tpu.memref_squeeze %69 : memref<1x!tpu.dma_semaphore, #tpu.memory_space<semaphore_mem>> -> memref<!tpu.dma_semaphore, #tpu.memory_space<semaphore_mem>>
      tpu.enqueue_dma source(%67 : memref<1x32xf32, #tpu.memory_space<any>>) target(%68 : memref<1x32xf32, #tpu.memory_space<vmem>>) target_semaphore(%70 : memref<!tpu.dma_semaphore, #tpu.memory_space<semaphore_mem>>)
      %c7_i32 = arith.constant 7 : i32
      %71 = arith.addi %7, %c7_i32 : i32
      %72 = arith.index_cast %71 : i32 to index
      %73 = memref.load %arg2[%72] : memref<32xi32, #tpu.memory_space<smem>>
      %c0_i32_48 = arith.constant 0 : i32
      %c255_i32_49 = arith.constant 255 : i32
      %74 = arith.maxsi %c0_i32_48, %73 : i32
      %75 = arith.minsi %c255_i32_49, %74 : i32
      %c0_i32_50 = arith.constant 0 : i32
      %c0_i32_51 = arith.constant 0 : i32
      %76 = tpu.memref_slice %arg3[%75, %c0_i32_51] : memref<256x32xf32, #tpu.memory_space<any>> -> memref<1x32xf32, #tpu.memory_space<any>>
      %c7_i32_52 = arith.constant 7 : i32
      %c0_i32_53 = arith.constant 0 : i32
      %77 = tpu.memref_slice %arg7[%c7_i32_52, %c0_i32_53] : memref<8x32xf32, #tpu.memory_space<vmem>> -> memref<1x32xf32, #tpu.memory_space<vmem>>
      %78 = tpu.memref_slice %arg9[%c0_i32_50] : memref<2x!tpu.dma_semaphore, #tpu.memory_space<semaphore_mem>> -> memref<1x!tpu.dma_semaphore, #tpu.memory_space<semaphore_mem>>
      %79 = tpu.memref_squeeze %78 : memref<1x!tpu.dma_semaphore, #tpu.memory_space<semaphore_mem>> -> memref<!tpu.dma_semaphore, #tpu.memory_space<semaphore_mem>>
      tpu.enqueue_dma source(%76 : memref<1x32xf32, #tpu.memory_space<any>>) target(%77 : memref<1x32xf32, #tpu.memory_space<vmem>>) target_semaphore(%79 : memref<!tpu.dma_semaphore, #tpu.memory_space<semaphore_mem>>)
      %c16_i32 = arith.constant 16 : i32
      %80 = arith.remsi %7, %c16_i32 : i32
      %c1_i32_54 = arith.constant 1 : i32
      %c0_i32_55 = arith.constant 0 : i32
      %81 = tpu.memref_slice %arg4[%80, %c0_i32_55] : memref<16x32xf32, #tpu.memory_space<any>> -> memref<8x32xf32, #tpu.memory_space<any>>
      %82 = tpu.memref_slice %arg9[%c1_i32_54] : memref<2x!tpu.dma_semaphore, #tpu.memory_space<semaphore_mem>> -> memref<1x!tpu.dma_semaphore, #tpu.memory_space<semaphore_mem>>
      %83 = tpu.memref_squeeze %82 : memref<1x!tpu.dma_semaphore, #tpu.memory_space<semaphore_mem>> -> memref<!tpu.dma_semaphore, #tpu.memory_space<semaphore_mem>>
      tpu.enqueue_dma source(%81 : memref<8x32xf32, #tpu.memory_space<any>>) target(%arg8 : memref<8x32xf32, #tpu.memory_space<vmem>>) target_semaphore(%83 : memref<!tpu.dma_semaphore, #tpu.memory_space<semaphore_mem>>)
      %c0_i32_56 = arith.constant 0 : i32
      %c8_i32_57 = arith.constant 8 : i32
      %84 = arith.addi %c0_i32_56, %c8_i32_57 : i32
      %c1_i32_58 = arith.constant 1 : i32
      scf.for %arg10 = %c0_i32_56 to %84 step %c1_i32_58  : i32 {
        %c0_i32_70 = arith.constant 0 : i32
        %c0_i32_71 = arith.constant 0 : i32
        %c0_i32_72 = arith.constant 0 : i32
        %93 = tpu.memref_slice %arg3[%c0_i32_71, %c0_i32_72] : memref<256x32xf32, #tpu.memory_space<any>> -> memref<1x32xf32, #tpu.memory_space<any>>
        %c0_i32_73 = arith.constant 0 : i32
        %c0_i32_74 = arith.constant 0 : i32
        %94 = tpu.memref_slice %arg7[%c0_i32_73, %c0_i32_74] : memref<8x32xf32, #tpu.memory_space<vmem>> -> memref<1x32xf32, #tpu.memory_space<vmem>>
        %95 = tpu.memref_slice %arg9[%c0_i32_70] : memref<2x!tpu.dma_semaphore, #tpu.memory_space<semaphore_mem>> -> memref<1x!tpu.dma_semaphore, #tpu.memory_space<semaphore_mem>>
        %96 = tpu.memref_squeeze %95 : memref<1x!tpu.dma_semaphore, #tpu.memory_space<semaphore_mem>> -> memref<!tpu.dma_semaphore, #tpu.memory_space<semaphore_mem>>
        tpu.wait_dma2 semaphore(%96 : memref<!tpu.dma_semaphore, #tpu.memory_space<semaphore_mem>>) src(%93 : memref<1x32xf32, #tpu.memory_space<any>>) dst(%94 : memref<1x32xf32, #tpu.memory_space<vmem>>)
      }
      %c1_i32_59 = arith.constant 1 : i32
      %c0_i32_60 = arith.constant 0 : i32
      %c0_i32_61 = arith.constant 0 : i32
      %85 = tpu.memref_slice %arg4[%c0_i32_60, %c0_i32_61] : memref<16x32xf32, #tpu.memory_space<any>> -> memref<8x32xf32, #tpu.memory_space<any>>
      %c0_i32_62 = arith.constant 0 : i32
      %c0_i32_63 = arith.constant 0 : i32
      %86 = tpu.memref_slice %arg8[%c0_i32_62, %c0_i32_63] : memref<8x32xf32, #tpu.memory_space<vmem>> -> memref<8x32xf32, #tpu.memory_space<vmem>>
      %87 = tpu.memref_slice %arg9[%c1_i32_59] : memref<2x!tpu.dma_semaphore, #tpu.memory_space<semaphore_mem>> -> memref<1x!tpu.dma_semaphore, #tpu.memory_space<semaphore_mem>>
      %88 = tpu.memref_squeeze %87 : memref<1x!tpu.dma_semaphore, #tpu.memory_space<semaphore_mem>> -> memref<!tpu.dma_semaphore, #tpu.memory_space<semaphore_mem>>
      tpu.wait_dma2 semaphore(%88 : memref<!tpu.dma_semaphore, #tpu.memory_space<semaphore_mem>>) src(%85 : memref<8x32xf32, #tpu.memory_space<any>>) dst(%86 : memref<8x32xf32, #tpu.memory_space<vmem>>)
      %c0_64 = arith.constant 0 : index
      %c0_65 = arith.constant 0 : index
      %89 = vector.load %arg7[%c0_64, %c0_65] : memref<8x32xf32, #tpu.memory_space<vmem>>, vector<8x32xf32>
      %c0_66 = arith.constant 0 : index
      %c0_67 = arith.constant 0 : index
      %90 = vector.load %arg8[%c0_66, %c0_67] : memref<8x32xf32, #tpu.memory_space<vmem>>, vector<8x32xf32>
      %91 = arith.addf %89, %90 : vector<8x32xf32>
      %c0_68 = arith.constant 0 : index
      %c0_69 = arith.constant 0 : index
      %92 = vector.load %arg7[%c0_68, %c0_69] : memref<8x32xf32, #tpu.memory_space<vmem>>, vector<8x32xf32>
      tpu.vector_store %arg7[%c0_68, %c0_69], %91 {strides = array<i32>} : memref<8x32xf32, #tpu.memory_space<vmem>>, vector<8x32xf32>,
    } else {
    }
    %c0 = arith.constant 0 : index
    %c0_1 = arith.constant 0 : index
    %3 = vector.load %arg7[%c0, %c0_1] : memref<8x32xf32, #tpu.memory_space<vmem>>, vector<8x32xf32>
    %c0_2 = arith.constant 0 : index
    %c0_3 = arith.constant 0 : index
    %4 = vector.load %arg5[%c0_2, %c0_3] : memref<128x32xf32, #tpu.memory_space<vmem>>, vector<128x32xf32>
    "tpu.trace_start"() <{level = 10 : i32, message = "ne,ve->nv"}> : () -> ()
    %cst = arith.constant dense<0.000000e+00> : vector<8x128xf32>
    %5 = tpu.matmul %3, %4, %cst {dimension_numbers = #tpu.dot_dimension_numbers<[1], [1], [0], [0], [0, 0, 1, 0], [], []>} : vector<8x32xf32>, vector<128x32xf32>, vector<8x128xf32> -> vector<8x128xf32>
    "tpu.trace_stop"() : () -> ()
    %c0_4 = arith.constant 0 : index
    %c0_5 = arith.constant 0 : index
    %6 = vector.load %arg6[%c0_4, %c0_5] : memref<8x128xf32, #tpu.memory_space<vmem>>, vector<8x128xf32>
    tpu.vector_store %arg6[%c0_4, %c0_5], %5 {strides = array<i32>} : memref<8x128xf32, #tpu.memory_space<vmem>>, vector<8x128xf32>,
    return
  }
  func.func @transform_2(%arg0: i32, %arg1: i32, %arg2: memref<32xi32, #tpu.memory_space<smem>>) -> (i32, i32) {
    %c0_i32 = arith.constant 0 : i32
    %c0_i32_0 = arith.constant 0 : i32
    return %arg1, %c0_i32 : i32, i32
  }
  func.func @transform_3(%arg0: i32, %arg1: i32, %arg2: memref<32xi32, #tpu.memory_space<smem>>) -> (i32, i32) {
    %c0_i32 = arith.constant 0 : i32
    return %arg0, %arg1 : i32, i32
  }
}

</mosaic_0001>

<llo_original>
// kernel: tpu_custom_call.1
$region0: #{tpu_custom_call.1}
  #allocation0 [shape = 'u32[]', space=smem, size = 0x4, offset = 0x4, fixed_abs, tag = 'smem constant byte address 0x4 - core index']
  #allocation1 [shape = 'u32[144,128]{1,0:T(1,128)}', space=vmem, size = 0x12000, scoped, tag = 'internal scratch']
  #allocation2 [shape = 'f32[8,32]{1,0:T(8,128)}', space=vmem, size = 0x1000, scoped, tag = 'scratch operand']
  #allocation3 [shape = 'f32[8,32]{1,0:T(8,128)}', space=vmem, size = 0x1000, scoped, tag = 'scratch operand']
  #allocation4 [shape = 's32[2]{0}', space=sflag, size = 0x8, scoped, tag = 'scratch operand']
  #allocation5 [shape = 's32[1]{0}', space=sflag, size = 0x4, scoped, tag = 'scoped memory for tpu_custom_call.1']
  #allocation6 [shape = 'u8[512]{0}', space=smem, size = 0x200, scoped, tag = 'prefetched SMEM operand 0']
  #allocation9 [shape = 's32[]', space=sflag, size = 0x4, offset = 0, fixed_abs, tag = 'sflag constant byte address 0x0 - dummy sync flag']
  #allocation10 [shape = 's32[]', space=sflag, size = 0x4, offset = 0, fixed_abs, tag = 'sflag constant byte address 0x0 - dummy sync flag']
  #allocation11 [shape = 's32[]', space=sflag, size = 0x4, offset = 0, fixed_abs, tag = 'sflag constant byte address 0x0 - dummy sync flag']
  #allocation12 [shape = 's32[]', space=sflag, size = 0x4, offset = 0, fixed_abs, tag = 'sflag constant byte address 0x0 - dummy sync flag']
  #allocation13 [shape = 's32[]', space=sflag, size = 0x4, offset = 0, fixed_abs, tag = 'sflag constant byte address 0x0 - dummy sync flag']
  #allocation14 [shape = 's32[]', space=sflag, size = 0x4, offset = 0, fixed_abs, tag = 'sflag constant byte address 0x0 - dummy sync flag']
  #allocation15 [shape = 's32[]', space=sflag, size = 0x4, offset = 0, fixed_abs, tag = 'sflag constant byte address 0x0 - dummy sync flag']
  #allocation16 [shape = 's32[]', space=sflag, size = 0x4, offset = 0, fixed_abs, tag = 'sflag constant byte address 0x0 - dummy sync flag']
  #allocation17 [shape = 's32[]', space=sflag, size = 0x4, offset = 0, fixed_abs, tag = 'sflag constant byte address 0x0 - dummy sync flag']
  %s0 = inlined_call_operand.vmem [shape: s32[32], index: 0, kind: input, shape index: {}]
  %s1 = inlined_call_operand.vmem [shape: f32[256,32], index: 1, kind: input, shape index: {}]
  %s2 = inlined_call_operand.vmem [shape: f32[16,32], index: 2, kind: input, shape index: {}]
  %s3 = inlined_call_operand.vmem [shape: f32[256,32], index: 3, kind: input, shape index: {}]
  %s4 = inlined_call_operand.hbm [shape: f32[32,256], index: 4, kind: output, shape index: {}]
  %s5 = sld [smem:[#allocation0]]
  $region322: #{tpu_custom_call.1} parent=0
    _
  %s7 = ssub.s32 1, %s5
  %s8 = scalar_select 0, %s7, %s5
  %s9 = sshll.u32 %s0, 4
  %s10 = int_to_ptr.vmem [resolvable:$true] %s9
  %12 = dma.vmem_to_smem %s10, 16, [#allocation6], [#allocation5]
  %13 = dma.done [#allocation5], 16
  %14 = sfence
  $region1: #{tpu_custom_call.1} parent=0
    #allocation7 [shape = 'u8[8192]{0}', space=vmem, size = 0x2000, scoped, tag = 'output window, operand 0']
    #allocation8 [shape = 's32[2]{0}', space=sflag, size = 0x8, scoped, tag = 'scoped memory for tpu_custom_call.1']
    %15 = vsyncpa [#allocation8], 0
    %s16 = scalar_lea.sflag [#allocation8], 1
    %17 = vsyncpa %s16, 0
    loop: start=0, step=1, limit=10
    $region2: #{tpu_custom_call.1} parent=1 // loop_pre_header
      _
    $region3: #{tpu_custom_call.1} parent=1 // loop_header
      %s19 = sphi 0, %s23
      %p20 = scmp.ge.s32.totalorder %s19, 10
      %s26 = sphi 0, %s38
      %s27 = sphi 0, %s34
      %s28 = sphi 0, %s26
      %s29 = sphi 0, %s27
      %s30 = sphi 0, %s28
      %s31 = sphi 0, %s29
      %s41 = sphi 0, %s43
      %s44 = sphi 0, %s41
      %s45 = sphi 0, %s44
      %s61 = sphi 0, %s45
      %s69 = sphi 0, %s71
      %s72 = sphi 0, %s69
      %s73 = sphi 0, %s72
      %s89 = sphi 0, %s73
    $region4: #{tpu_custom_call.1} parent=1 // loop_header_branch
      %22 = sbr.rel (%p20) target = $region8
    $region5: #{tpu_custom_call.1} parent=1 // loop_body
      %s24 = ssub.s32 %s19, 1
      %s25 = ssub.s32 %s19, 2
      %s32 = sadd.s32 1, %s27
      %p33 = scmp.ge.s32.totalorder %s32, 2
      %s34 = scalar_select %p33, 0, %s32
      %s35 = sadd.s32 1, %s26
      %s36 = scalar_select %p33, %s35, %s26
      %p37 = scmp.ge.s32.totalorder %s36, 4
      %s38 = scalar_select %p37, 0, %s36
      %s39 = ssub.s32 %s27, %s34
      %p40 = scmp.eq.s32.totalorder %s39, 0
      %s42 = sadd.s32 %s41, 1
      %s43 = scalar_select %p40, %s41, %s42
      %p46 = pneg %p40
      %p47 = scmp.eq.s32.totalorder %s19, 7
      %p48 = por %p46, %p47
      %p49 = scmp.ne.s32.totalorder %s41, %s44
      %p50 = scmp.eq.s32.totalorder %s19, 0
      %p51 = por %p49, %p50
      %p52 = scmp.ne.s32.totalorder %s41, %s44
      %p53 = scmp.eq.s32.totalorder %s24, 7
      %p54 = por %p52, %p53
      %p55 = scmp.ne.s32.totalorder %s44, %s45
      %p56 = scmp.eq.s32.totalorder %s24, 0
      %p57 = por %p55, %p56
      %p58 = scmp.ne.s32.totalorder %s44, %s45
      %p59 = scmp.eq.s32.totalorder %s25, 7
      %p60 = por %p58, %p59
      %p62 = scmp.ne.s32.totalorder %s45, %s61
      %p63 = scmp.eq.s32.totalorder %s25, 0
      %p64 = por %p62, %p63
      %s65 = ssub.s32 %s26, %s38
      %s66 = ssub.s32 %s27, %s34
      %s67 = sor.u32 %s65, %s66
      %p68 = scmp.eq.s32.totalorder %s67, 0
      %s70 = sadd.s32 %s69, 1
      %s71 = scalar_select %p68, %s69, %s70
      %p74 = pneg %p68
      %p75 = scmp.eq.s32.totalorder %s19, 7
      %p76 = por %p74, %p75
      %p77 = scmp.ne.s32.totalorder %s69, %s72
      %p78 = scmp.eq.s32.totalorder %s19, 0
      %p79 = por %p77, %p78
      %p80 = scmp.ne.s32.totalorder %s69, %s72
      %p81 = scmp.eq.s32.totalorder %s24, 7
      %p82 = por %p80, %p81
      %p83 = scmp.ne.s32.totalorder %s72, %s73
      %p84 = scmp.eq.s32.totalorder %s24, 0
      %p85 = por %p83, %p84
      %p86 = scmp.ne.s32.totalorder %s72, %s73
      %p87 = scmp.eq.s32.totalorder %s25, 7
      %p88 = por %p86, %p87
      %p90 = scmp.ne.s32.totalorder %s73, %s89
      %p91 = scmp.eq.s32.totalorder %s25, 0
      %p92 = por %p90, %p91
      %p93 = scmp.le.s32.totalorder 1, %s19
      %p94 = scmp.lt.s32.totalorder %s19, 9
      %p95 = pnand %p93, %p94
      %p96 = pneg %p95
      // Predicated region
      $region9: #{tpu_custom_call.1} parent=5 // pred_check
        _
      $region10: #{tpu_custom_call.1} parent=5 // pred_check_branch
        %98 = sbr.rel (%p95) target = $region12
      $region11: #{tpu_custom_call.1} parent=5 // pred_region
        %s99 = ssub.s32 %s19, 1
      $region12: #{tpu_custom_call.1} parent=5 // pred_fallthru
        _
      %p100 = scmp.lt.s32.totalorder %s19, 8
      // Predicated region
      $region13: #{tpu_custom_call.1} parent=5 // pred_check
        %p101 = pneg %p100
      $region14: #{tpu_custom_call.1} parent=5 // pred_check_branch
        %103 = sbr.rel (%p101) target = $region16
      $region15: #{tpu_custom_call.1} parent=5 // pred_region
        // Predicated region
        $region17: #{tpu_custom_call.1} parent=15 // pred_check
          %p104 = pneg %p51
        $region18: #{tpu_custom_call.1} parent=15 // pred_check_branch
          %106 = sbr.rel (%p104) target = $region20
        $region19: #{tpu_custom_call.1} parent=15 // pred_region
          %s107 = smul.u32 16, %s27
          %p108 = scmp.lt.s32.totalorder %s107, 31
          %s109 = scalar_select %p108, %s107, 31
          %s110 = smul.addr %s109, 8
          %s111 = scalar_lea.vmem %s3, %s110
          %s112 = smul.u32 16, %s27
        $region20: #{tpu_custom_call.1} parent=15 // pred_fallthru
          _
      $region16: #{tpu_custom_call.1} parent=5 // pred_fallthru
        _
      %p113 = scmp.le.s32.totalorder 1, %s19
      %p114 = scmp.lt.s32.totalorder %s19, 9
      %p115 = pnand %p113, %p114
      %p116 = pneg %p115
      // Predicated region
      $region21: #{tpu_custom_call.1} parent=5 // pred_check
        _
      $region22: #{tpu_custom_call.1} parent=5 // pred_check_branch
        %118 = sbr.rel (%p115) target = $region24
      $region23: #{tpu_custom_call.1} parent=5 // pred_region
        %s119 = ssub.s32 %s19, 1
        %s120 = smul.u32 16, %s29
        %p121 = scmp.lt.s32.totalorder %s120, 31
        %s122 = scalar_select %p121, %s120, 31
        %s123 = smul.addr %s122, 8
        %s124 = scalar_lea.vmem %s3, %s123
        %p125 = pneg %p57
        %p126 = pneg %p54
        %p127 = pneg %p85
        %p128 = pneg %p82
        %s129 = sand.u32 %s72, 1
        %s130 = scalar_lea.sflag [#allocation8], %s129
        %s131 = sand.u32 %s72, 1
        %s132 = smul.addr %s131, 8
        %s133 = scalar_lea.vmem [#allocation7], %s132
        %s134 = smul.u32 16, %s29
        %p135 = scmp.lt.s32.totalorder %s134, 31
        %s136 = scalar_select %p135, %s134, 31
        %s137 = smul.addr %s136, 8
        %s138 = scalar_lea.vmem %s3, %s137
        %s139 = smul.u32 16, %s29
        %p140 = scmp.eq.s32.totalorder %s29, 0
        // Predicated region
        $region25: #{tpu_custom_call.1} parent=23 // pred_check
          %p141 = pneg %p140
        $region26: #{tpu_custom_call.1} parent=23 // pred_check_branch
          %143 = sbr.rel (%p141) target = $region28
        $region27: #{tpu_custom_call.1} parent=23 // pred_region
          %s144 = smul.u32 %s28, 8
          %s145 = sld [smem:[#allocation6 + %s144]]
          %p146 = scmp.gt.s32.totalorder %s145, 0
          %s147 = scalar_select %p146, %s145, 0
          %p148 = scmp.lt.s32.totalorder %s147, 255
          %s149 = scalar_select %p148, %s147, 255
          %s150 = scalar_lea.vmem %s1, %s149
          %p152 = scmp.lt.u32.totalorder 1, 8
          %p153 = pneg %p152
          // Predicated region
          $region29: #{tpu_custom_call.1} parent=27 // pred_check
            _
          $region30: #{tpu_custom_call.1} parent=27 // pred_check_branch
            %155 = sbr.rel (%p152) target = $region32
          $region31: #{tpu_custom_call.1} parent=27 // pred_region
            %s171 = sand.u32 1, 7
            %p172 = scmp.eq.s32.totalorder %s171, 0
            %p173 = pneg %p172
            // Predicated region
            $region44: #{tpu_custom_call.1} parent=31 // pred_check
              _
            $region45: #{tpu_custom_call.1} parent=31 // pred_check_branch
              %175 = sbr.rel (%p172) target = $region47
            $region46: #{tpu_custom_call.1} parent=31 // pred_region
              %s176 = sand.u32 1, 7
              %s177 = ssub.s32 1, %s176
              %s178 = scalar_lea.vmem %s150, %s177
              %s179 = ssub.s32 1, %s176
              %s180 = scalar_lea.vmem [#allocation2], %s179
              %s181 = sshll.u32 1, %s176
              %s182 = ssub.s32 %s181, 1
              loop: start=0, step=1, limit=1
              $region48: #{tpu_custom_call.1} parent=46 // loop_pre_header
                _
              $region49: #{tpu_custom_call.1} parent=46 // loop_header
                %s184 = sphi 0, %s188
                %p185 = scmp.ge.s32.totalorder %s184, 1
                %s189 = sphi %s178, %s178
                %s190 = sphi %s180, %s180
              $region50: #{tpu_custom_call.1} parent=46 // loop_header_branch
                %187 = sbr.rel (%p185) target = $region54
              $region51: #{tpu_custom_call.1} parent=46 // loop_body
                %v191 = vld [vmem:[%s189] sm:%s182]
                %192 = vst [vmem:[%s190] sm:%s182] %v191
              $region52: #{tpu_custom_call.1} parent=46 // loop_footer
                %s188 = sadd.s32 1, %s184
              $region53: #{tpu_custom_call.1} parent=46 // loop_footer_branch
                %183 = sbr.rel target = $region49
              $region54: #{tpu_custom_call.1} parent=46 // loop_exit
                _
            $region47: #{tpu_custom_call.1} parent=31 // pred_fallthru
              _
          $region32: #{tpu_custom_call.1} parent=27 // pred_fallthru
            _
          // Predicated region
          $region33: #{tpu_custom_call.1} parent=27 // pred_check
            %p156 = pneg %p152
          $region34: #{tpu_custom_call.1} parent=27 // pred_check_branch
            %158 = sbr.rel (%p156) target = $region36
          $region35: #{tpu_custom_call.1} parent=27 // pred_region
            %s159 = sshll.u32 1, 1
            %s160 = ssub.s32 %s159, 1
            loop: start=0, step=1, limit=1
            $region37: #{tpu_custom_call.1} parent=35 // loop_pre_header
              _
            $region38: #{tpu_custom_call.1} parent=35 // loop_header
              %s162 = sphi 0, %s166
              %p163 = scmp.ge.s32.totalorder %s162, 1
              %s167 = sphi %s150, %s150
              %s168 = sphi [#allocation2], [#allocation2]
            $region39: #{tpu_custom_call.1} parent=35 // loop_header_branch
              %165 = sbr.rel (%p163) target = $region43
            $region40: #{tpu_custom_call.1} parent=35 // loop_body
              %v169 = vld [vmem:[%s167] sm:%s160]
              %170 = vst [vmem:[%s168] sm:%s160] %v169
            $region41: #{tpu_custom_call.1} parent=35 // loop_footer
              %s166 = sadd.s32 1, %s162
            $region42: #{tpu_custom_call.1} parent=35 // loop_footer_branch
              %161 = sbr.rel target = $region38
            $region43: #{tpu_custom_call.1} parent=35 // loop_exit
              _
          $region36: #{tpu_custom_call.1} parent=27 // pred_fallthru
            _
          // Predicated region
          $region55: #{tpu_custom_call.1} parent=27 // pred_check
            _
          $region56: #{tpu_custom_call.1} parent=27 // pred_check_branch
            %195 = sbr.rel (0) target = $region58
          $region57: #{tpu_custom_call.1} parent=27 // pred_region
            %196 = vsyncadd [#allocation4], 16
          $region58: #{tpu_custom_call.1} parent=27 // pred_fallthru
            _
          %s197 = sadd.s32 %s144, 1
          %s198 = sld [smem:[#allocation6 + %s197]]
          %p199 = scmp.gt.s32.totalorder %s198, 0
          %s200 = scalar_select %p199, %s198, 0
          %p201 = scmp.lt.s32.totalorder %s200, 255
          %s202 = scalar_select %p201, %s200, 255
          %s203 = scalar_lea.vmem %s1, %s202
          %s204 = scalar_lea.vmem [#allocation2], 1
          %p206 = scmp.lt.u32.totalorder 1, 8
          %p207 = pneg %p206
          // Predicated region
          $region59: #{tpu_custom_call.1} parent=27 // pred_check
            _
          $region60: #{tpu_custom_call.1} parent=27 // pred_check_branch
            %209 = sbr.rel (%p206) target = $region62
          $region61: #{tpu_custom_call.1} parent=27 // pred_region
            %s225 = sand.u32 1, 7
            %p226 = scmp.eq.s32.totalorder %s225, 0
            %p227 = pneg %p226
            // Predicated region
            $region74: #{tpu_custom_call.1} parent=61 // pred_check
              _
            $region75: #{tpu_custom_call.1} parent=61 // pred_check_branch
              %229 = sbr.rel (%p226) target = $region77
            $region76: #{tpu_custom_call.1} parent=61 // pred_region
              %s230 = sand.u32 1, 7
              %s231 = ssub.s32 1, %s230
              %s232 = scalar_lea.vmem %s203, %s231
              %s233 = ssub.s32 1, %s230
              %s234 = scalar_lea.vmem %s204, %s233 [#allocation2]
              %s235 = sshll.u32 1, %s230
              %s236 = ssub.s32 %s235, 1
              loop: start=0, step=1, limit=1
              $region78: #{tpu_custom_call.1} parent=76 // loop_pre_header
                _
              $region79: #{tpu_custom_call.1} parent=76 // loop_header
                %s238 = sphi 0, %s242
                %p239 = scmp.ge.s32.totalorder %s238, 1
                %s243 = sphi %s232, %s232
                %s244 = sphi %s234, %s234
              $region80: #{tpu_custom_call.1} parent=76 // loop_header_branch
                %241 = sbr.rel (%p239) target = $region84
              $region81: #{tpu_custom_call.1} parent=76 // loop_body
                %v245 = vld [vmem:[%s243] sm:%s236]
                %246 = vst [vmem:[%s244] sm:%s236] %v245
              $region82: #{tpu_custom_call.1} parent=76 // loop_footer
                %s242 = sadd.s32 1, %s238
              $region83: #{tpu_custom_call.1} parent=76 // loop_footer_branch
                %237 = sbr.rel target = $region79
              $region84: #{tpu_custom_call.1} parent=76 // loop_exit
                _
            $region77: #{tpu_custom_call.1} parent=61 // pred_fallthru
              _
          $region62: #{tpu_custom_call.1} parent=27 // pred_fallthru
            _
          // Predicated region
          $region63: #{tpu_custom_call.1} parent=27 // pred_check
            %p210 = pneg %p206
          $region64: #{tpu_custom_call.1} parent=27 // pred_check_branch
            %212 = sbr.rel (%p210) target = $region66
          $region65: #{tpu_custom_call.1} parent=27 // pred_region
            %s213 = sshll.u32 1, 1
            %s214 = ssub.s32 %s213, 1
            loop: start=0, step=1, limit=1
            $region67: #{tpu_custom_call.1} parent=65 // loop_pre_header
              _
            $region68: #{tpu_custom_call.1} parent=65 // loop_header
              %s216 = sphi 0, %s220
              %p217 = scmp.ge.s32.totalorder %s216, 1
              %s221 = sphi %s203, %s203
              %s222 = sphi %s204, %s204
            $region69: #{tpu_custom_call.1} parent=65 // loop_header_branch
              %219 = sbr.rel (%p217) target = $region73
            $region70: #{tpu_custom_call.1} parent=65 // loop_body
              %v223 = vld [vmem:[%s221] sm:%s214]
              %224 = vst [vmem:[%s222] sm:%s214] %v223
            $region71: #{tpu_custom_call.1} parent=65 // loop_footer
              %s220 = sadd.s32 1, %s216
            $region72: #{tpu_custom_call.1} parent=65 // loop_footer_branch
              %215 = sbr.rel target = $region68
            $region73: #{tpu_custom_call.1} parent=65 // loop_exit
              _
          $region66: #{tpu_custom_call.1} parent=27 // pred_fallthru
            _
          // Predicated region
          $region85: #{tpu_custom_call.1} parent=27 // pred_check
            _
          $region86: #{tpu_custom_call.1} parent=27 // pred_check_branch
            %249 = sbr.rel (0) target = $region88
          $region87: #{tpu_custom_call.1} parent=27 // pred_region
            %250 = vsyncadd [#allocation4], 16
          $region88: #{tpu_custom_call.1} parent=27 // pred_fallthru
            _
          %s251 = sadd.s32 %s144, 2
          %s252 = sld [smem:[#allocation6 + %s251]]
          %p253 = scmp.gt.s32.totalorder %s252, 0
          %s254 = scalar_select %p253, %s252, 0
          %p255 = scmp.lt.s32.totalorder %s254, 255
          %s256 = scalar_select %p255, %s254, 255
          %s257 = scalar_lea.vmem %s1, %s256
          %s258 = scalar_lea.vmem [#allocation2], 2
          %p260 = scmp.lt.u32.totalorder 1, 8
          %p261 = pneg %p260
          // Predicated region
          $region89: #{tpu_custom_call.1} parent=27 // pred_check
            _
          $region90: #{tpu_custom_call.1} parent=27 // pred_check_branch
            %263 = sbr.rel (%p260) target = $region92
          $region91: #{tpu_custom_call.1} parent=27 // pred_region
            %s279 = sand.u32 1, 7
            %p280 = scmp.eq.s32.totalorder %s279, 0
            %p281 = pneg %p280
            // Predicated region
            $region104: #{tpu_custom_call.1} parent=91 // pred_check
              _
            $region105: #{tpu_custom_call.1} parent=91 // pred_check_branch
              %283 = sbr.rel (%p280) target = $region107
            $region106: #{tpu_custom_call.1} parent=91 // pred_region
              %s284 = sand.u32 1, 7
              %s285 = ssub.s32 1, %s284
              %s286 = scalar_lea.vmem %s257, %s285
              %s287 = ssub.s32 1, %s284
              %s288 = scalar_lea.vmem %s258, %s287 [#allocation2]
              %s289 = sshll.u32 1, %s284
              %s290 = ssub.s32 %s289, 1
              loop: start=0, step=1, limit=1
              $region108: #{tpu_custom_call.1} parent=106 // loop_pre_header
                _
              $region109: #{tpu_custom_call.1} parent=106 // loop_header
                %s292 = sphi 0, %s296
                %p293 = scmp.ge.s32.totalorder %s292, 1
                %s297 = sphi %s286, %s286
                %s298 = sphi %s288, %s288
              $region110: #{tpu_custom_call.1} parent=106 // loop_header_branch
                %295 = sbr.rel (%p293) target = $region114
              $region111: #{tpu_custom_call.1} parent=106 // loop_body
                %v299 = vld [vmem:[%s297] sm:%s290]
                %300 = vst [vmem:[%s298] sm:%s290] %v299
              $region112: #{tpu_custom_call.1} parent=106 // loop_footer
                %s296 = sadd.s32 1, %s292
              $region113: #{tpu_custom_call.1} parent=106 // loop_footer_branch
                %291 = sbr.rel target = $region109
              $region114: #{tpu_custom_call.1} parent=106 // loop_exit
                _
            $region107: #{tpu_custom_call.1} parent=91 // pred_fallthru
              _
          $region92: #{tpu_custom_call.1} parent=27 // pred_fallthru
            _
          // Predicated region
          $region93: #{tpu_custom_call.1} parent=27 // pred_check
            %p264 = pneg %p260
          $region94: #{tpu_custom_call.1} parent=27 // pred_check_branch
            %266 = sbr.rel (%p264) target = $region96
          $region95: #{tpu_custom_call.1} parent=27 // pred_region
            %s267 = sshll.u32 1, 1
            %s268 = ssub.s32 %s267, 1
            loop: start=0, step=1, limit=1
            $region97: #{tpu_custom_call.1} parent=95 // loop_pre_header
              _
            $region98: #{tpu_custom_call.1} parent=95 // loop_header
              %s270 = sphi 0, %s274
              %p271 = scmp.ge.s32.totalorder %s270, 1
              %s275 = sphi %s257, %s257
              %s276 = sphi %s258, %s258
            $region99: #{tpu_custom_call.1} parent=95 // loop_header_branch
              %273 = sbr.rel (%p271) target = $region103
            $region100: #{tpu_custom_call.1} parent=95 // loop_body
              %v277 = vld [vmem:[%s275] sm:%s268]
              %278 = vst [vmem:[%s276] sm:%s268] %v277
            $region101: #{tpu_custom_call.1} parent=95 // loop_footer
              %s274 = sadd.s32 1, %s270
            $region102: #{tpu_custom_call.1} parent=95 // loop_footer_branch
              %269 = sbr.rel target = $region98
            $region103: #{tpu_custom_call.1} parent=95 // loop_exit
              _
          $region96: #{tpu_custom_call.1} parent=27 // pred_fallthru
            _
          // Predicated region
          $region115: #{tpu_custom_call.1} parent=27 // pred_check
            _
          $region116: #{tpu_custom_call.1} parent=27 // pred_check_branch
            %303 = sbr.rel (0) target = $region118
          $region117: #{tpu_custom_call.1} parent=27 // pred_region
            %304 = vsyncadd [#allocation4], 16
          $region118: #{tpu_custom_call.1} parent=27 // pred_fallthru
            _
          %s305 = sadd.s32 %s144, 3
          %s306 = sld [smem:[#allocation6 + %s305]]
          %p307 = scmp.gt.s32.totalorder %s306, 0
          %s308 = scalar_select %p307, %s306, 0
          %p309 = scmp.lt.s32.totalorder %s308, 255
          %s310 = scalar_select %p309, %s308, 255
          %s311 = scalar_lea.vmem %s1, %s310
          %s312 = scalar_lea.vmem [#allocation2], 3
          %p314 = scmp.lt.u32.totalorder 1, 8
          %p315 = pneg %p314
          // Predicated region
          $region119: #{tpu_custom_call.1} parent=27 // pred_check
            _
          $region120: #{tpu_custom_call.1} parent=27 // pred_check_branch
            %317 = sbr.rel (%p314) target = $region122
          $region121: #{tpu_custom_call.1} parent=27 // pred_region
            %s333 = sand.u32 1, 7
            %p334 = scmp.eq.s32.totalorder %s333, 0
            %p335 = pneg %p334
            // Predicated region
            $region134: #{tpu_custom_call.1} parent=121 // pred_check
              _
            $region135: #{tpu_custom_call.1} parent=121 // pred_check_branch
              %337 = sbr.rel (%p334) target = $region137
            $region136: #{tpu_custom_call.1} parent=121 // pred_region
              %s338 = sand.u32 1, 7
              %s339 = ssub.s32 1, %s338
              %s340 = scalar_lea.vmem %s311, %s339
              %s341 = ssub.s32 1, %s338
              %s342 = scalar_lea.vmem %s312, %s341 [#allocation2]
              %s343 = sshll.u32 1, %s338
              %s344 = ssub.s32 %s343, 1
              loop: start=0, step=1, limit=1
              $region138: #{tpu_custom_call.1} parent=136 // loop_pre_header
                _
              $region139: #{tpu_custom_call.1} parent=136 // loop_header
                %s346 = sphi 0, %s350
                %p347 = scmp.ge.s32.totalorder %s346, 1
                %s351 = sphi %s340, %s340
                %s352 = sphi %s342, %s342
              $region140: #{tpu_custom_call.1} parent=136 // loop_header_branch
                %349 = sbr.rel (%p347) target = $region144
              $region141: #{tpu_custom_call.1} parent=136 // loop_body
                %v353 = vld [vmem:[%s351] sm:%s344]
                %354 = vst [vmem:[%s352] sm:%s344] %v353
              $region142: #{tpu_custom_call.1} parent=136 // loop_footer
                %s350 = sadd.s32 1, %s346
              $region143: #{tpu_custom_call.1} parent=136 // loop_footer_branch
                %345 = sbr.rel target = $region139
              $region144: #{tpu_custom_call.1} parent=136 // loop_exit
                _
            $region137: #{tpu_custom_call.1} parent=121 // pred_fallthru
              _
          $region122: #{tpu_custom_call.1} parent=27 // pred_fallthru
            _
          // Predicated region
          $region123: #{tpu_custom_call.1} parent=27 // pred_check
            %p318 = pneg %p314
          $region124: #{tpu_custom_call.1} parent=27 // pred_check_branch
            %320 = sbr.rel (%p318) target = $region126
          $region125: #{tpu_custom_call.1} parent=27 // pred_region
            %s321 = sshll.u32 1, 1
            %s322 = ssub.s32 %s321, 1
            loop: start=0, step=1, limit=1
            $region127: #{tpu_custom_call.1} parent=125 // loop_pre_header
              _
            $region128: #{tpu_custom_call.1} parent=125 // loop_header
              %s324 = sphi 0, %s328
              %p325 = scmp.ge.s32.totalorder %s324, 1
              %s329 = sphi %s311, %s311
              %s330 = sphi %s312, %s312
            $region129: #{tpu_custom_call.1} parent=125 // loop_header_branch
              %327 = sbr.rel (%p325) target = $region133
            $region130: #{tpu_custom_call.1} parent=125 // loop_body
              %v331 = vld [vmem:[%s329] sm:%s322]
              %332 = vst [vmem:[%s330] sm:%s322] %v331
            $region131: #{tpu_custom_call.1} parent=125 // loop_footer
              %s328 = sadd.s32 1, %s324
            $region132: #{tpu_custom_call.1} parent=125 // loop_footer_branch
              %323 = sbr.rel target = $region128
            $region133: #{tpu_custom_call.1} parent=125 // loop_exit
              _
          $region126: #{tpu_custom_call.1} parent=27 // pred_fallthru
            _
          // Predicated region
          $region145: #{tpu_custom_call.1} parent=27 // pred_check
            _
          $region146: #{tpu_custom_call.1} parent=27 // pred_check_branch
            %357 = sbr.rel (0) target = $region148
          $region147: #{tpu_custom_call.1} parent=27 // pred_region
            %358 = vsyncadd [#allocation4], 16
          $region148: #{tpu_custom_call.1} parent=27 // pred_fallthru
            _
          %s359 = sadd.s32 %s144, 4
          %s360 = sld [smem:[#allocation6 + %s359]]
          %p361 = scmp.gt.s32.totalorder %s360, 0
          %s362 = scalar_select %p361, %s360, 0
          %p363 = scmp.lt.s32.totalorder %s362, 255
          %s364 = scalar_select %p363, %s362, 255
          %s365 = scalar_lea.vmem %s1, %s364
          %s366 = scalar_lea.vmem [#allocation2], 4
          %p368 = scmp.lt.u32.totalorder 1, 8
          %p369 = pneg %p368
          // Predicated region
          $region149: #{tpu_custom_call.1} parent=27 // pred_check
            _
          $region150: #{tpu_custom_call.1} parent=27 // pred_check_branch
            %371 = sbr.rel (%p368) target = $region152
          $region151: #{tpu_custom_call.1} parent=27 // pred_region
            %s387 = sand.u32 1, 7
            %p388 = scmp.eq.s32.totalorder %s387, 0
            %p389 = pneg %p388
            // Predicated region
            $region164: #{tpu_custom_call.1} parent=151 // pred_check
              _
            $region165: #{tpu_custom_call.1} parent=151 // pred_check_branch
              %391 = sbr.rel (%p388) target = $region167
            $region166: #{tpu_custom_call.1} parent=151 // pred_region
              %s392 = sand.u32 1, 7
              %s393 = ssub.s32 1, %s392
              %s394 = scalar_lea.vmem %s365, %s393
              %s395 = ssub.s32 1, %s392
              %s396 = scalar_lea.vmem %s366, %s395 [#allocation2]
              %s397 = sshll.u32 1, %s392
              %s398 = ssub.s32 %s397, 1
              loop: start=0, step=1, limit=1
              $region168: #{tpu_custom_call.1} parent=166 // loop_pre_header
                _
              $region169: #{tpu_custom_call.1} parent=166 // loop_header
                %s400 = sphi 0, %s404
                %p401 = scmp.ge.s32.totalorder %s400, 1
                %s405 = sphi %s394, %s394
                %s406 = sphi %s396, %s396
              $region170: #{tpu_custom_call.1} parent=166 // loop_header_branch
                %403 = sbr.rel (%p401) target = $region174
              $region171: #{tpu_custom_call.1} parent=166 // loop_body
                %v407 = vld [vmem:[%s405] sm:%s398]
                %408 = vst [vmem:[%s406] sm:%s398] %v407
              $region172: #{tpu_custom_call.1} parent=166 // loop_footer
                %s404 = sadd.s32 1, %s400
              $region173: #{tpu_custom_call.1} parent=166 // loop_footer_branch
                %399 = sbr.rel target = $region169
              $region174: #{tpu_custom_call.1} parent=166 // loop_exit
                _
            $region167: #{tpu_custom_call.1} parent=151 // pred_fallthru
              _
          $region152: #{tpu_custom_call.1} parent=27 // pred_fallthru
            _
          // Predicated region
          $region153: #{tpu_custom_call.1} parent=27 // pred_check
            %p372 = pneg %p368
          $region154: #{tpu_custom_call.1} parent=27 // pred_check_branch
            %374 = sbr.rel (%p372) target = $region156
          $region155: #{tpu_custom_call.1} parent=27 // pred_region
            %s375 = sshll.u32 1, 1
            %s376 = ssub.s32 %s375, 1
            loop: start=0, step=1, limit=1
            $region157: #{tpu_custom_call.1} parent=155 // loop_pre_header
              _
            $region158: #{tpu_custom_call.1} parent=155 // loop_header
              %s378 = sphi 0, %s382
              %p379 = scmp.ge.s32.totalorder %s378, 1
              %s383 = sphi %s365, %s365
              %s384 = sphi %s366, %s366
            $region159: #{tpu_custom_call.1} parent=155 // loop_header_branch
              %381 = sbr.rel (%p379) target = $region163
            $region160: #{tpu_custom_call.1} parent=155 // loop_body
              %v385 = vld [vmem:[%s383] sm:%s376]
              %386 = vst [vmem:[%s384] sm:%s376] %v385
            $region161: #{tpu_custom_call.1} parent=155 // loop_footer
              %s382 = sadd.s32 1, %s378
            $region162: #{tpu_custom_call.1} parent=155 // loop_footer_branch
              %377 = sbr.rel target = $region158
            $region163: #{tpu_custom_call.1} parent=155 // loop_exit
              _
          $region156: #{tpu_custom_call.1} parent=27 // pred_fallthru
            _
          // Predicated region
          $region175: #{tpu_custom_call.1} parent=27 // pred_check
            _
          $region176: #{tpu_custom_call.1} parent=27 // pred_check_branch
            %411 = sbr.rel (0) target = $region178
          $region177: #{tpu_custom_call.1} parent=27 // pred_region
            %412 = vsyncadd [#allocation4], 16
          $region178: #{tpu_custom_call.1} parent=27 // pred_fallthru
            _
          %s413 = sadd.s32 %s144, 5
          %s414 = sld [smem:[#allocation6 + %s413]]
          %p415 = scmp.gt.s32.totalorder %s414, 0
          %s416 = scalar_select %p415, %s414, 0
          %p417 = scmp.lt.s32.totalorder %s416, 255
          %s418 = scalar_select %p417, %s416, 255
          %s419 = scalar_lea.vmem %s1, %s418
          %s420 = scalar_lea.vmem [#allocation2], 5
          %p422 = scmp.lt.u32.totalorder 1, 8
          %p423 = pneg %p422
          // Predicated region
          $region179: #{tpu_custom_call.1} parent=27 // pred_check
            _
          $region180: #{tpu_custom_call.1} parent=27 // pred_check_branch
            %425 = sbr.rel (%p422) target = $region182
          $region181: #{tpu_custom_call.1} parent=27 // pred_region
            %s441 = sand.u32 1, 7
            %p442 = scmp.eq.s32.totalorder %s441, 0
            %p443 = pneg %p442
            // Predicated region
            $region194: #{tpu_custom_call.1} parent=181 // pred_check
              _
            $region195: #{tpu_custom_call.1} parent=181 // pred_check_branch
              %445 = sbr.rel (%p442) target = $region197
            $region196: #{tpu_custom_call.1} parent=181 // pred_region
              %s446 = sand.u32 1, 7
              %s447 = ssub.s32 1, %s446
              %s448 = scalar_lea.vmem %s419, %s447
              %s449 = ssub.s32 1, %s446
              %s450 = scalar_lea.vmem %s420, %s449 [#allocation2]
              %s451 = sshll.u32 1, %s446
              %s452 = ssub.s32 %s451, 1
              loop: start=0, step=1, limit=1
              $region198: #{tpu_custom_call.1} parent=196 // loop_pre_header
                _
              $region199: #{tpu_custom_call.1} parent=196 // loop_header
                %s454 = sphi 0, %s458
                %p455 = scmp.ge.s32.totalorder %s454, 1
                %s459 = sphi %s448, %s448
                %s460 = sphi %s450, %s450
              $region200: #{tpu_custom_call.1} parent=196 // loop_header_branch
                %457 = sbr.rel (%p455) target = $region204
              $region201: #{tpu_custom_call.1} parent=196 // loop_body
                %v461 = vld [vmem:[%s459] sm:%s452]
                %462 = vst [vmem:[%s460] sm:%s452] %v461
              $region202: #{tpu_custom_call.1} parent=196 // loop_footer
                %s458 = sadd.s32 1, %s454
              $region203: #{tpu_custom_call.1} parent=196 // loop_footer_branch
                %453 = sbr.rel target = $region199
              $region204: #{tpu_custom_call.1} parent=196 // loop_exit
                _
            $region197: #{tpu_custom_call.1} parent=181 // pred_fallthru
              _
          $region182: #{tpu_custom_call.1} parent=27 // pred_fallthru
            _
          // Predicated region
          $region183: #{tpu_custom_call.1} parent=27 // pred_check
            %p426 = pneg %p422
          $region184: #{tpu_custom_call.1} parent=27 // pred_check_branch
            %428 = sbr.rel (%p426) target = $region186
          $region185: #{tpu_custom_call.1} parent=27 // pred_region
            %s429 = sshll.u32 1, 1
            %s430 = ssub.s32 %s429, 1
            loop: start=0, step=1, limit=1
            $region187: #{tpu_custom_call.1} parent=185 // loop_pre_header
              _
            $region188: #{tpu_custom_call.1} parent=185 // loop_header
              %s432 = sphi 0, %s436
              %p433 = scmp.ge.s32.totalorder %s432, 1
              %s437 = sphi %s419, %s419
              %s438 = sphi %s420, %s420
            $region189: #{tpu_custom_call.1} parent=185 // loop_header_branch
              %435 = sbr.rel (%p433) target = $region193
            $region190: #{tpu_custom_call.1} parent=185 // loop_body
              %v439 = vld [vmem:[%s437] sm:%s430]
              %440 = vst [vmem:[%s438] sm:%s430] %v439
            $region191: #{tpu_custom_call.1} parent=185 // loop_footer
              %s436 = sadd.s32 1, %s432
            $region192: #{tpu_custom_call.1} parent=185 // loop_footer_branch
              %431 = sbr.rel target = $region188
            $region193: #{tpu_custom_call.1} parent=185 // loop_exit
              _
          $region186: #{tpu_custom_call.1} parent=27 // pred_fallthru
            _
          // Predicated region
          $region205: #{tpu_custom_call.1} parent=27 // pred_check
            _
          $region206: #{tpu_custom_call.1} parent=27 // pred_check_branch
            %465 = sbr.rel (0) target = $region208
          $region207: #{tpu_custom_call.1} parent=27 // pred_region
            %466 = vsyncadd [#allocation4], 16
          $region208: #{tpu_custom_call.1} parent=27 // pred_fallthru
            _
          %s467 = sadd.s32 %s144, 6
          %s468 = sld [smem:[#allocation6 + %s467]]
          %p469 = scmp.gt.s32.totalorder %s468, 0
          %s470 = scalar_select %p469, %s468, 0
          %p471 = scmp.lt.s32.totalorder %s470, 255
          %s472 = scalar_select %p471, %s470, 255
          %s473 = scalar_lea.vmem %s1, %s472
          %s474 = scalar_lea.vmem [#allocation2], 6
          %p476 = scmp.lt.u32.totalorder 1, 8
          %p477 = pneg %p476
          // Predicated region
          $region209: #{tpu_custom_call.1} parent=27 // pred_check
            _
          $region210: #{tpu_custom_call.1} parent=27 // pred_check_branch
            %479 = sbr.rel (%p476) target = $region212
          $region211: #{tpu_custom_call.1} parent=27 // pred_region
            %s495 = sand.u32 1, 7
            %p496 = scmp.eq.s32.totalorder %s495, 0
            %p497 = pneg %p496
            // Predicated region
            $region224: #{tpu_custom_call.1} parent=211 // pred_check
              _
            $region225: #{tpu_custom_call.1} parent=211 // pred_check_branch
              %499 = sbr.rel (%p496) target = $region227
            $region226: #{tpu_custom_call.1} parent=211 // pred_region
              %s500 = sand.u32 1, 7
              %s501 = ssub.s32 1, %s500
              %s502 = scalar_lea.vmem %s473, %s501
              %s503 = ssub.s32 1, %s500
              %s504 = scalar_lea.vmem %s474, %s503 [#allocation2]
              %s505 = sshll.u32 1, %s500
              %s506 = ssub.s32 %s505, 1
              loop: start=0, step=1, limit=1
              $region228: #{tpu_custom_call.1} parent=226 // loop_pre_header
                _
              $region229: #{tpu_custom_call.1} parent=226 // loop_header
                %s508 = sphi 0, %s512
                %p509 = scmp.ge.s32.totalorder %s508, 1
                %s513 = sphi %s502, %s502
                %s514 = sphi %s504, %s504
              $region230: #{tpu_custom_call.1} parent=226 // loop_header_branch
                %511 = sbr.rel (%p509) target = $region234
              $region231: #{tpu_custom_call.1} parent=226 // loop_body
                %v515 = vld [vmem:[%s513] sm:%s506]
                %516 = vst [vmem:[%s514] sm:%s506] %v515
              $region232: #{tpu_custom_call.1} parent=226 // loop_footer
                %s512 = sadd.s32 1, %s508
              $region233: #{tpu_custom_call.1} parent=226 // loop_footer_branch
                %507 = sbr.rel target = $region229
              $region234: #{tpu_custom_call.1} parent=226 // loop_exit
                _
            $region227: #{tpu_custom_call.1} parent=211 // pred_fallthru
              _
          $region212: #{tpu_custom_call.1} parent=27 // pred_fallthru
            _
          // Predicated region
          $region213: #{tpu_custom_call.1} parent=27 // pred_check
            %p480 = pneg %p476
          $region214: #{tpu_custom_call.1} parent=27 // pred_check_branch
            %482 = sbr.rel (%p480) target = $region216
          $region215: #{tpu_custom_call.1} parent=27 // pred_region
            %s483 = sshll.u32 1, 1
            %s484 = ssub.s32 %s483, 1
            loop: start=0, step=1, limit=1
            $region217: #{tpu_custom_call.1} parent=215 // loop_pre_header
              _
            $region218: #{tpu_custom_call.1} parent=215 // loop_header
              %s486 = sphi 0, %s490
              %p487 = scmp.ge.s32.totalorder %s486, 1
              %s491 = sphi %s473, %s473
              %s492 = sphi %s474, %s474
            $region219: #{tpu_custom_call.1} parent=215 // loop_header_branch
              %489 = sbr.rel (%p487) target = $region223
            $region220: #{tpu_custom_call.1} parent=215 // loop_body
              %v493 = vld [vmem:[%s491] sm:%s484]
              %494 = vst [vmem:[%s492] sm:%s484] %v493
            $region221: #{tpu_custom_call.1} parent=215 // loop_footer
              %s490 = sadd.s32 1, %s486
            $region222: #{tpu_custom_call.1} parent=215 // loop_footer_branch
              %485 = sbr.rel target = $region218
            $region223: #{tpu_custom_call.1} parent=215 // loop_exit
              _
          $region216: #{tpu_custom_call.1} parent=27 // pred_fallthru
            _
          // Predicated region
          $region235: #{tpu_custom_call.1} parent=27 // pred_check
            _
          $region236: #{tpu_custom_call.1} parent=27 // pred_check_branch
            %519 = sbr.rel (0) target = $region238
          $region237: #{tpu_custom_call.1} parent=27 // pred_region
            %520 = vsyncadd [#allocation4], 16
          $region238: #{tpu_custom_call.1} parent=27 // pred_fallthru
            _
          %s521 = sadd.s32 %s144, 7
          %s522 = sld [smem:[#allocation6 + %s521]]
          %p523 = scmp.gt.s32.totalorder %s522, 0
          %s524 = scalar_select %p523, %s522, 0
          %p525 = scmp.lt.s32.totalorder %s524, 255
          %s526 = scalar_select %p525, %s524, 255
          %s527 = scalar_lea.vmem %s1, %s526
          %s528 = scalar_lea.vmem [#allocation2], 7
          %p530 = scmp.lt.u32.totalorder 1, 8
          %p531 = pneg %p530
          // Predicated region
          $region239: #{tpu_custom_call.1} parent=27 // pred_check
            _
          $region240: #{tpu_custom_call.1} parent=27 // pred_check_branch
            %533 = sbr.rel (%p530) target = $region242
          $region241: #{tpu_custom_call.1} parent=27 // pred_region
            %s549 = sand.u32 1, 7
            %p550 = scmp.eq.s32.totalorder %s549, 0
            %p551 = pneg %p550
            // Predicated region
            $region254: #{tpu_custom_call.1} parent=241 // pred_check
              _
            $region255: #{tpu_custom_call.1} parent=241 // pred_check_branch
              %553 = sbr.rel (%p550) target = $region257
            $region256: #{tpu_custom_call.1} parent=241 // pred_region
              %s554 = sand.u32 1, 7
              %s555 = ssub.s32 1, %s554
              %s556 = scalar_lea.vmem %s527, %s555
              %s557 = ssub.s32 1, %s554
              %s558 = scalar_lea.vmem %s528, %s557 [#allocation2]
              %s559 = sshll.u32 1, %s554
              %s560 = ssub.s32 %s559, 1
              loop: start=0, step=1, limit=1
              $region258: #{tpu_custom_call.1} parent=256 // loop_pre_header
                _
              $region259: #{tpu_custom_call.1} parent=256 // loop_header
                %s562 = sphi 0, %s566
                %p563 = scmp.ge.s32.totalorder %s562, 1
                %s567 = sphi %s556, %s556
                %s568 = sphi %s558, %s558
              $region260: #{tpu_custom_call.1} parent=256 // loop_header_branch
                %565 = sbr.rel (%p563) target = $region264
              $region261: #{tpu_custom_call.1} parent=256 // loop_body
                %v569 = vld [vmem:[%s567] sm:%s560]
                %570 = vst [vmem:[%s568] sm:%s560] %v569
              $region262: #{tpu_custom_call.1} parent=256 // loop_footer
                %s566 = sadd.s32 1, %s562
              $region263: #{tpu_custom_call.1} parent=256 // loop_footer_branch
                %561 = sbr.rel target = $region259
              $region264: #{tpu_custom_call.1} parent=256 // loop_exit
                _
            $region257: #{tpu_custom_call.1} parent=241 // pred_fallthru
              _
          $region242: #{tpu_custom_call.1} parent=27 // pred_fallthru
            _
          // Predicated region
          $region243: #{tpu_custom_call.1} parent=27 // pred_check
            %p534 = pneg %p530
          $region244: #{tpu_custom_call.1} parent=27 // pred_check_branch
            %536 = sbr.rel (%p534) target = $region246
          $region245: #{tpu_custom_call.1} parent=27 // pred_region
            %s537 = sshll.u32 1, 1
            %s538 = ssub.s32 %s537, 1
            loop: start=0, step=1, limit=1
            $region247: #{tpu_custom_call.1} parent=245 // loop_pre_header
              _
            $region248: #{tpu_custom_call.1} parent=245 // loop_header
              %s540 = sphi 0, %s544
              %p541 = scmp.ge.s32.totalorder %s540, 1
              %s545 = sphi %s527, %s527
              %s546 = sphi %s528, %s528
            $region249: #{tpu_custom_call.1} parent=245 // loop_header_branch
              %543 = sbr.rel (%p541) target = $region253
            $region250: #{tpu_custom_call.1} parent=245 // loop_body
              %v547 = vld [vmem:[%s545] sm:%s538]
              %548 = vst [vmem:[%s546] sm:%s538] %v547
            $region251: #{tpu_custom_call.1} parent=245 // loop_footer
              %s544 = sadd.s32 1, %s540
            $region252: #{tpu_custom_call.1} parent=245 // loop_footer_branch
              %539 = sbr.rel target = $region248
            $region253: #{tpu_custom_call.1} parent=245 // loop_exit
              _
          $region246: #{tpu_custom_call.1} parent=27 // pred_fallthru
            _
          // Predicated region
          $region265: #{tpu_custom_call.1} parent=27 // pred_check
            _
          $region266: #{tpu_custom_call.1} parent=27 // pred_check_branch
            %573 = sbr.rel (0) target = $region268
          $region267: #{tpu_custom_call.1} parent=27 // pred_region
            %574 = vsyncadd [#allocation4], 16
          $region268: #{tpu_custom_call.1} parent=27 // pred_fallthru
            _
          %p575 = scmp.lt.s32.totalorder %s144, 0
          %s576 = ssub.s32 0, %s144
          %s577 = scalar_select %p575, %s576, %s144
          %s578 = sand.u32 %s577, 15
          %s579 = ssub.s32 0, %s578
          %s580 = scalar_select %p575, %s579, %s578
          %s581 = scalar_lea.vmem %s2, %s580
          %s582 = scalar_lea.sflag [#allocation4], 1
          %p584 = scmp.lt.u32.totalorder 8, 8
          %p585 = pneg %p584
          // Predicated region
          $region269: #{tpu_custom_call.1} parent=27 // pred_check
            _
          $region270: #{tpu_custom_call.1} parent=27 // pred_check_branch
            %587 = sbr.rel (%p584) target = $region272
          $region271: #{tpu_custom_call.1} parent=27 // pred_region
            %s603 = sand.u32 8, 7
            %p604 = scmp.eq.s32.totalorder %s603, 0
            // Predicated region
            $region284: #{tpu_custom_call.1} parent=271 // pred_check
              %p605 = pneg %p604
            $region285: #{tpu_custom_call.1} parent=271 // pred_check_branch
              %607 = sbr.rel (%p605) target = $region287
            $region286: #{tpu_custom_call.1} parent=271 // pred_region
              loop: start=0, step=1, limit=1
              $region288: #{tpu_custom_call.1} parent=286 // loop_pre_header
                _
              $region289: #{tpu_custom_call.1} parent=286 // loop_header
                %s609 = sphi 0, %s613
                %p610 = scmp.ge.s32.totalorder %s609, 1
                %s614 = sphi %s581, %s581
                %s615 = sphi [#allocation3], [#allocation3]
              $region290: #{tpu_custom_call.1} parent=286 // loop_header_branch
                %612 = sbr.rel (%p610) target = $region294
              $region291: #{tpu_custom_call.1} parent=286 // loop_body
                %v616 = vld [vmem:[%s614] sm:$0xff]
                %617 = vst [vmem:[%s615] sm:$0xff] %v616
              $region292: #{tpu_custom_call.1} parent=286 // loop_footer
                %s613 = sadd.s32 1, %s609
              $region293: #{tpu_custom_call.1} parent=286 // loop_footer_branch
                %608 = sbr.rel target = $region289
              $region294: #{tpu_custom_call.1} parent=286 // loop_exit
                _
            $region287: #{tpu_custom_call.1} parent=271 // pred_fallthru
              _
            %p618 = pneg %p604
            // Predicated region
            $region295: #{tpu_custom_call.1} parent=271 // pred_check
              _
            $region296: #{tpu_custom_call.1} parent=271 // pred_check_branch
              %620 = sbr.rel (%p604) target = $region298
            $region297: #{tpu_custom_call.1} parent=271 // pred_region
              %s621 = sand.u32 8, 7
            $region298: #{tpu_custom_call.1} parent=271 // pred_fallthru
              _
          $region272: #{tpu_custom_call.1} parent=27 // pred_fallthru
            _
          // Predicated region
          $region273: #{tpu_custom_call.1} parent=27 // pred_check
            %p588 = pneg %p584
          $region274: #{tpu_custom_call.1} parent=27 // pred_check_branch
            %590 = sbr.rel (%p588) target = $region276
          $region275: #{tpu_custom_call.1} parent=27 // pred_region
            %s591 = sshll.u32 1, 8
            %s592 = ssub.s32 %s591, 1
            loop: start=0, step=1, limit=1
            $region277: #{tpu_custom_call.1} parent=275 // loop_pre_header
              _
            $region278: #{tpu_custom_call.1} parent=275 // loop_header
              %s594 = sphi 0, %s598
              %p595 = scmp.ge.s32.totalorder %s594, 1
              %s599 = sphi %s581, %s581
              %s600 = sphi [#allocation3], [#allocation3]
            $region279: #{tpu_custom_call.1} parent=275 // loop_header_branch
              %597 = sbr.rel (%p595) target = $region283
            $region280: #{tpu_custom_call.1} parent=275 // loop_body
              %v601 = vld [vmem:[%s599] sm:%s592]
              %602 = vst [vmem:[%s600] sm:%s592] %v601
            $region281: #{tpu_custom_call.1} parent=275 // loop_footer
              %s598 = sadd.s32 1, %s594
            $region282: #{tpu_custom_call.1} parent=275 // loop_footer_branch
              %593 = sbr.rel target = $region278
            $region283: #{tpu_custom_call.1} parent=275 // loop_exit
              _
          $region276: #{tpu_custom_call.1} parent=27 // pred_fallthru
            _
          // Predicated region
          $region299: #{tpu_custom_call.1} parent=27 // pred_check
            _
          $region300: #{tpu_custom_call.1} parent=27 // pred_check_branch
            %624 = sbr.rel (0) target = $region302
          $region301: #{tpu_custom_call.1} parent=27 // pred_region
            %625 = vsyncadd %s582, 128
          $region302: #{tpu_custom_call.1} parent=27 // pred_fallthru
            _
          loop: start=0, step=1, limit=8
          $region303: #{tpu_custom_call.1} parent=27 // loop_pre_header
            _
          $region304: #{tpu_custom_call.1} parent=27 // loop_header
            %s627 = sphi 0, %s631
            %p628 = scmp.ge.s32.totalorder %s627, 8
          $region305: #{tpu_custom_call.1} parent=27 // loop_header_branch
            %630 = sbr.rel (%p628) target = $region309
          $region306: #{tpu_custom_call.1} parent=27 // loop_body
            %s632 = smul.u32 1, 1
            %s633 = sshll.u32 %s632, 4
            %634 = dma.done [#allocation4], %s633
          $region307: #{tpu_custom_call.1} parent=27 // loop_footer
            %s631 = sadd.s32 1, %s627
          $region308: #{tpu_custom_call.1} parent=27 // loop_footer_branch
            %626 = sbr.rel target = $region304
          $region309: #{tpu_custom_call.1} parent=27 // loop_exit
            _
          %s635 = smul.u32 8, 1
          %s636 = sshll.u32 %s635, 4
          %637 = dma.done %s582, %s636
          %v638 = vld [vmem:[#allocation2] sm:$0xff]
          %v639 = vld [vmem:[#allocation3] sm:$0xff]
          %v640 = vadd.f32 %v638, %v639
          %vm641 = vcmask 261120
          %642 = vst.msk [vmem:[#allocation2] sm:$0xff] %vm641, %v640
        $region28: #{tpu_custom_call.1} parent=23 // pred_fallthru
          _
        %v643 = vld [vmem:[#allocation2] sm:$0xff]
        %v644 = vld [vmem:[%s138] sm:$0xff]
        %v645 = vld [vmem:[%s138 + $0x8] sm:$0xff]
        %v646 = vld [vmem:[%s138 + $0x10] sm:$0xff]
        %v647 = vld [vmem:[%s138 + $0x18] sm:$0xff]
        %v648 = vld [vmem:[%s138 + $0x20] sm:$0xff]
        %v649 = vld [vmem:[%s138 + $0x28] sm:$0xff]
        %v650 = vld [vmem:[%s138 + $0x30] sm:$0xff]
        %v651 = vld [vmem:[%s138 + $0x38] sm:$0xff]
        %v652 = vld [vmem:[%s138 + $0x40] sm:$0xff]
        %v653 = vld [vmem:[%s138 + $0x48] sm:$0xff]
        %v654 = vld [vmem:[%s138 + $0x50] sm:$0xff]
        %v655 = vld [vmem:[%s138 + $0x58] sm:$0xff]
        %v656 = vld [vmem:[%s138 + $0x60] sm:$0xff]
        %v657 = vld [vmem:[%s138 + $0x68] sm:$0xff]
        %v658 = vld [vmem:[%s138 + $0x70] sm:$0xff]
        %v659 = vld [vmem:[%s138 + $0x78] sm:$0xff]
        %vm660 = vcmask 261120
        %v662 = vsel %vm660, %v643, 0
        %v665 = vsel %vm660, %v644, 0
        %v668 = vsel %vm660, %v645, 0
        %v671 = vsel %vm660, %v646, 0
        %v674 = vsel %vm660, %v647, 0
        %v677 = vsel %vm660, %v648, 0
        %v680 = vsel %vm660, %v649, 0
        %v683 = vsel %vm660, %v650, 0
        %v686 = vsel %vm660, %v651, 0
        %v689 = vsel %vm660, %v652, 0
        %v692 = vsel %vm660, %v653, 0
        %v695 = vsel %vm660, %v654, 0
        %v698 = vsel %vm660, %v655, 0
        %v701 = vsel %vm660, %v656, 0
        %v704 = vsel %vm660, %v657, 0
        %v707 = vsel %vm660, %v658, 0
        %v710 = vsel %vm660, %v659, 0
        %712 = vmatprep.subr.mxu0 0.0
        %713 = vmatpush1.xpose.msra.mxu0 %v710
        %714 = vmatprep.subr.mxu0 0.0
        %715 = vmatpush1.xpose.msra.mxu0 %v707
        %716 = vmatprep.subr.mxu0 0.0
        %717 = vmatpush1.xpose.msra.mxu0 %v704
        %718 = vmatprep.subr.mxu0 0.0
        %719 = vmatpush1.xpose.msra.mxu0 %v701
        %720 = vmatprep.subr.mxu0 0.0
        %721 = vmatpush1.xpose.msra.mxu0 %v698
        %722 = vmatprep.subr.mxu0 0.0
        %723 = vmatpush1.xpose.msra.mxu0 %v695
        %724 = vmatprep.subr.mxu0 0.0
        %725 = vmatpush1.xpose.msra.mxu0 %v692
        %726 = vmatprep.subr.mxu0 0.0
        %727 = vmatpush1.xpose.msra.mxu0 %v689
        %728 = vmatprep.subr.mxu0 0.0
        %729 = vmatpush1.xpose.msra.mxu0 %v686
        %730 = vmatprep.subr.mxu0 0.0
        %731 = vmatpush1.xpose.msra.mxu0 %v683
        %732 = vmatprep.subr.mxu0 0.0
        %733 = vmatpush1.xpose.msra.mxu0 %v680
        %734 = vmatprep.subr.mxu0 0.0
        %735 = vmatpush1.xpose.msra.mxu0 %v677
        %736 = vmatprep.subr.mxu0 0.0
        %737 = vmatpush1.xpose.msra.mxu0 %v674
        %738 = vmatprep.subr.mxu0 0.0
        %739 = vmatpush1.xpose.msra.mxu0 %v671
        %740 = vmatprep.subr.mxu0 0.0
        %741 = vmatpush1.xpose.msra.mxu0 %v668
        %742 = vmatprep.subr.mxu0 0.0
        %743 = vmatpush1.xpose.msra.mxu0 %v665
        %744 = vmatprep.subr.mxu0 0.0
        %745 = vmatpush2.xpose.msra.mxu0 0.0
        %746 = vmatprep.subr.mxu0 0.0
        %747 = vmatpush2.xpose.msra.mxu0 0.0
        %748 = vmatprep.subr.mxu0 0.0
        %749 = vmatpush2.xpose.msra.mxu0 0.0
        %750 = vmatprep.subr.mxu0 0.0
        %751 = vmatpush2.xpose.msra.mxu0 0.0
        %752 = vmatprep.subr.mxu0 0.0
        %753 = vmatpush2.xpose.msra.mxu0 0.0
        %754 = vmatprep.subr.mxu0 0.0
        %755 = vmatpush2.xpose.msra.mxu0 0.0
        %756 = vmatprep.subr.mxu0 0.0
        %757 = vmatpush2.xpose.msra.mxu0 0.0
        %758 = vmatprep.subr.mxu0 0.0
        %759 = vmatpush2.xpose.msra.mxu0 0.0
        %760 = vmatprep.subr.mxu0 0.0
        %761 = vmatpush2.xpose.msra.mxu0 0.0
        %762 = vmatprep.subr.mxu0 0.0
        %763 = vmatpush2.xpose.msra.mxu0 0.0
        %764 = vmatprep.subr.mxu0 0.0
        %765 = vmatpush2.xpose.msra.mxu0 0.0
        %766 = vmatprep.subr.mxu0 0.0
        %767 = vmatpush2.xpose.msra.mxu0 0.0
        %768 = vmatprep.subr.mxu0 0.0
        %769 = vmatpush2.xpose.msra.mxu0 0.0
        %770 = vmatprep.subr.mxu0 0.0
        %771 = vmatpush2.xpose.msra.mxu0 0.0
        %772 = vmatprep.subr.mxu0 0.0
        %773 = vmatpush2.xpose.msra.mxu0 0.0
        %774 = vmatprep.subr.mxu0 0.0
        %775 = vmatpush2.xpose.msra.mxu0 0.0
        %776 = vmatprep.mubr.f32.mxu0 0.0
        %777 = vmatmul.mubr.f32.gmra.mxu0 %v662
        %v778 = vpop.f32.mrf.mxu0
        %v779 = vadd.f32 0.0, %v778
        %v780 = vpop.f32.mrf.mxu0
        %781 = vdwg.mxu0
        %782 = vst [vmem:[%s133] sm:$0xff] %v779
        %s783 = sand.u32 %s72, 1
        %s784 = scalar_lea.sflag [#allocation8], %s783
        %s785 = sand.u32 %s72, 1
        %s786 = smul.addr %s785, 8
        %s787 = scalar_lea.vmem [#allocation7], %s786
        // Predicated region
        $region310: #{tpu_custom_call.1} parent=23 // pred_check
          %p788 = pneg %p82
        $region311: #{tpu_custom_call.1} parent=23 // pred_check_branch
          %790 = sbr.rel (%p788) target = $region313
        $region312: #{tpu_custom_call.1} parent=23 // pred_region
          %s792 = ssub.s32 128, 128
          %793 = vsyncadd %s784, %s792
          %s794 = smul.addr %s28, 2
          %s795 = sadd.s32 %s29, %s794
          %s796 = smul.addr %s795, 128
          %s797 = scalar_lea.hbm %s4, %s796
          %s799 = sshll.u32 %s787, 4
          %s800 = int_to_ptr.vmem [resolvable:$true] %s799
          %802 = dma.vmem_to_hbm [thread:$0]  %s800, 128, %s797, %s784
        $region313: #{tpu_custom_call.1} parent=23 // pred_fallthru
          _
      $region24: #{tpu_custom_call.1} parent=5 // pred_fallthru
        _
      %p803 = scmp.le.s32.totalorder 2, %s19
      // Predicated region
      $region314: #{tpu_custom_call.1} parent=5 // pred_check
        %p804 = pneg %p803
      $region315: #{tpu_custom_call.1} parent=5 // pred_check_branch
        %806 = sbr.rel (%p804) target = $region317
      $region316: #{tpu_custom_call.1} parent=5 // pred_region
        %s807 = ssub.s32 %s19, 2
        // Predicated region
        $region318: #{tpu_custom_call.1} parent=316 // pred_check
          %p808 = pneg %p88
        $region319: #{tpu_custom_call.1} parent=316 // pred_check_branch
          %810 = sbr.rel (%p808) target = $region321
        $region320: #{tpu_custom_call.1} parent=316 // pred_region
          %s811 = sand.u32 %s73, 1
          %s812 = scalar_lea.sflag [#allocation8], %s811
          %s813 = sand.u32 %s73, 1
          %s814 = smul.addr %s813, 8
          %s815 = scalar_lea.vmem [#allocation7], %s814
          %816 = dma.done %s812, 128
        $region321: #{tpu_custom_call.1} parent=316 // pred_fallthru
          _
      $region317: #{tpu_custom_call.1} parent=5 // pred_fallthru
        _
    $region6: #{tpu_custom_call.1} parent=1 // loop_footer
      %s23 = sadd.s32 1, %s19
    $region7: #{tpu_custom_call.1} parent=1 // loop_footer_branch
      %18 = sbr.rel target = $region3
    $region8: #{tpu_custom_call.1} parent=1 // loop_exit
      _
    %817 = vsyncpa [#allocation8], 1
    %s818 = scalar_lea.sflag [#allocation8], 1
    %819 = vsyncpa %s818, 1
  %820 = vsyncmov [#allocation4]
  %s821 = vpop.sfrf %820
  %p822 = scmp.eq.s32.totalorder %s821, 0
  %p823 = pneg %p822
  %825 = shalt.err (%p823)
  %s826 = scalar_lea.sflag [#allocation4], 1
  %827 = vsyncmov %s826
  %s828 = vpop.sfrf %827
  %p829 = scmp.eq.s32.totalorder %s828, 0
  %p830 = pneg %p829
  %832 = shalt.err (%p830)

</llo_original>
